<compile_context>
chip_gen: v5e
topology: v5e:2x2
jax: 0.10.0
libtpu: 0.0.40
codegen_flags: <defaults>
</compile_context>

<pallas_src>
import jax
import jax.numpy as jnp
from jax.experimental import pallas as pl
from jax.experimental.pallas import tpu as pltpu  # noqa: F401  (TPU backend)

B, D_IN, HID, LAT = 8, 16, 32, 8
BN_EPS = 1e-5


def encoder_kernel(x_ref, w1_ref, gb_ref, wh_ref, bh_ref, out_ref):
    x = x_ref[...]

    # Hidden layer: Linear (bias dropped — cancelled by BN mean subtraction).
    h = jnp.dot(x, w1_ref[...], preferred_element_type=jnp.float32)

    # Training-mode batch stats in one pass (biased variance).
    inv_b = 1.0 / h.shape[0]
    mean = jnp.sum(h, axis=0, keepdims=True) * inv_b
    ex2 = jnp.sum(h * h, axis=0, keepdims=True) * inv_b
    var = ex2 - mean * mean

    # Fold BN affine into a single scale/shift, then ReLU.
    gamma = gb_ref[0:1, :]
    beta = gb_ref[1:2, :]
    scale = gamma * jax.lax.rsqrt(var + BN_EPS)
    shift = beta - mean * scale
    a = jnp.maximum(h * scale + shift, 0.0)

    # Fused heads: one matmul, one lane-dense [B, 2*LAT] store.
    out_ref[...] = (jnp.dot(a, wh_ref[...], preferred_element_type=jnp.float32)
                    + bh_ref[...])


def encoder_forward(x, w1, b1, gamma, beta, w_mu, b_mu, w_lv, b_lv):
    # Host-side packing: b1 is mathematically cancelled by training-mode BN,
    # gamma/beta share one buffer, the two heads share one weight and bias.
    del b1
    gb = jnp.concatenate([gamma, beta], axis=0)        # [2, HID]
    w_heads = jnp.concatenate([w_mu, w_lv], axis=1)    # [HID, 2*LAT]
    b_heads = jnp.concatenate([b_mu, b_lv], axis=1)    # [1, 2*LAT]

    full = lambda shape: pl.BlockSpec(shape, lambda: tuple(0 for _ in shape))
    out = pl.pallas_call(
        encoder_kernel,
        grid=(),
        in_specs=[
            full(x.shape), full(w1.shape), full(gb.shape),
            full(w_heads.shape), full(b_heads.shape),
        ],
        out_specs=full((B, 2 * LAT)),
        out_shape=jax.ShapeDtypeStruct((B, 2 * LAT), jnp.float32),
    )(x, w1, gb, w_heads, b_heads)
    return out[:, :LAT], out[:, LAT:]


def reference_forward(x, w1, b1, gamma, beta, w_mu, b_mu, w_lv, b_lv):
    h = x @ w1 + b1
    mean = jnp.mean(h, axis=0, keepdims=True)
    var = jnp.mean((h - mean) ** 2, axis=0, keepdims=True)
    h = (h - mean) / jnp.sqrt(var + BN_EPS) * gamma + beta
    a = jnp.maximum(h, 0.0)
    return a @ w_mu + b_mu, a @ w_lv + b_lv


def init_params(key):
    # Deterministic init mimicking nn.Linear default U(-1/sqrt(fan_in), 1/sqrt(fan_in)).
    ks = jax.random.split(key, 6)

    def lin(kw, kb, fan_in, fan_out):
        bound = 1.0 / jnp.sqrt(fan_in)
        w = jax.random.uniform(kw, (fan_in, fan_out), jnp.float32, -bound, bound)
        b = jax.random.uniform(kb, (1, fan_out), jnp.float32, -bound, bound)
        return w, b

    w1, b1 = lin(ks[0], ks[1], D_IN, HID)
    w_mu, b_mu = lin(ks[2], ks[3], HID, LAT)
    w_lv, b_lv = lin(ks[4], ks[5], HID, LAT)
    gamma = jnp.ones((1, HID), jnp.float32)   # BatchNorm1d affine init
    beta = jnp.zeros((1, HID), jnp.float32)
    return w1, b1, gamma, beta, w_mu, b_mu, w_lv, b_lv


if __name__ == "__main__":
    key = jax.random.PRNGKey(0)
    k_x, k_p = jax.random.split(key)
    x = jax.random.normal(k_x, (B, D_IN), jnp.float32)
    params = init_params(k_p)

    mu, logvar = encoder_forward(x, *params)
    jax.block_until_ready(mu)
    jax.block_until_ready(logvar)

    mu_ref, lv_ref = reference_forward(x, *params)
    assert jnp.allclose(mu, mu_ref, atol=1e-4, rtol=1e-4)
    assert jnp.allclose(logvar, lv_ref, atol=1e-4, rtol=1e-4)

    print("KERNEL_OK")
</pallas_src>

<mosaic_0001>
module attributes {stable_mosaic.version = 11 : i64} {
  func.func @encoder_kernel(%arg0: memref<8x16xf32, #tpu.memory_space<vmem>>, %arg1: memref<16x32xf32, #tpu.memory_space<vmem>>, %arg2: memref<2x32xf32, #tpu.memory_space<vmem>>, %arg3: memref<32x16xf32, #tpu.memory_space<vmem>>, %arg4: memref<1x16xf32, #tpu.memory_space<vmem>>, %arg5: memref<8x16xf32, #tpu.memory_space<vmem>>) attributes {dimension_semantics = [], scalar_prefetch = 0 : i64, scratch_operands = 0 : i64, tpu.core_type = #tpu.core_type<tc>} {
    %c0 = arith.constant 0 : index
    %c0_0 = arith.constant 0 : index
    %0 = vector.load %arg0[%c0, %c0_0] : memref<8x16xf32, #tpu.memory_space<vmem>>, vector<8x16xf32>
    %c0_1 = arith.constant 0 : index
    %c0_2 = arith.constant 0 : index
    %1 = vector.load %arg1[%c0_1, %c0_2] : memref<16x32xf32, #tpu.memory_space<vmem>>, vector<16x32xf32>
    %cst = arith.constant dense<0.000000e+00> : vector<8x32xf32>
    %2 = tpu.matmul %0, %1, %cst {dimension_numbers = #tpu.dot_dimension_numbers<[1], [0], [0], [1], [0, 0, 1, 1], [], []>} : vector<8x16xf32>, vector<16x32xf32>, vector<8x32xf32> -> vector<8x32xf32>
    %cst_3 = arith.constant dense<0.000000e+00> : vector<32xf32>
    %3 = vector.multi_reduction <add>, %2, %cst_3 [0] : vector<8x32xf32> to vector<32xf32>
    %4 = vector.shape_cast %3 : vector<32xf32> to vector<1x32xf32>
    %cst_4 = arith.constant 1.250000e-01 : f32
    %5 = vector.broadcast %cst_4 : f32 to vector<1x32xf32>
    %6 = arith.mulf %4, %5 : vector<1x32xf32>
    %7 = arith.mulf %2, %2 : vector<8x32xf32>
    %cst_5 = arith.constant dense<0.000000e+00> : vector<32xf32>
    %8 = vector.multi_reduction <add>, %7, %cst_5 [0] : vector<8x32xf32> to vector<32xf32>
    %9 = vector.shape_cast %8 : vector<32xf32> to vector<1x32xf32>
    %cst_6 = arith.constant 1.250000e-01 : f32
    %10 = vector.broadcast %cst_6 : f32 to vector<1x32xf32>
    %11 = arith.mulf %9, %10 : vector<1x32xf32>
    %12 = arith.mulf %6, %6 : vector<1x32xf32>
    %13 = arith.subf %11, %12 : vector<1x32xf32>
    %c0_7 = arith.constant 0 : index
    %c0_8 = arith.constant 0 : index
    %14 = vector.load %arg2[%c0_7, %c0_8] : memref<2x32xf32, #tpu.memory_space<vmem>>, vector<1x32xf32>
    %c1 = arith.constant 1 : index
    %c0_9 = arith.constant 0 : index
    %15 = vector.load %arg2[%c1, %c0_9] : memref<2x32xf32, #tpu.memory_space<vmem>>, vector<1x32xf32>
    %cst_10 = arith.constant 9.99999974E-6 : f32
    %16 = vector.broadcast %cst_10 : f32 to vector<1x32xf32>
    %17 = arith.addf %13, %16 : vector<1x32xf32>
    %18 = math.rsqrt %17 : vector<1x32xf32>
    %19 = arith.mulf %14, %18 : vector<1x32xf32>
    %20 = arith.mulf %6, %19 : vector<1x32xf32>
    %21 = arith.subf %15, %20 : vector<1x32xf32>
    %22 = vector.broadcast %19 : vector<1x32xf32> to vector<8x32xf32>
    %23 = arith.mulf %2, %22 : vector<8x32xf32>
    %24 = vector.broadcast %21 : vector<1x32xf32> to vector<8x32xf32>
    %25 = arith.addf %23, %24 : vector<8x32xf32>
    %cst_11 = arith.constant 0.000000e+00 : f32
    %26 = vector.broadcast %cst_11 : f32 to vector<8x32xf32>
    %27 = arith.maximumf %25, %26 : vector<8x32xf32>
    %c0_12 = arith.constant 0 : index
    %c0_13 = arith.constant 0 : index
    %28 = vector.load %arg3[%c0_12, %c0_13] : memref<32x16xf32, #tpu.memory_space<vmem>>, vector<32x16xf32>
    %cst_14 = arith.constant dense<0.000000e+00> : vector<8x16xf32>
    %29 = tpu.matmul %27, %28, %cst_14 {dimension_numbers = #tpu.dot_dimension_numbers<[1], [0], [0], [1], [0, 0, 1, 1], [], []>} : vector<8x32xf32>, vector<32x16xf32>, vector<8x16xf32> -> vector<8x16xf32>
    %c0_15 = arith.constant 0 : index
    %c0_16 = arith.constant 0 : index
    %30 = vector.load %arg4[%c0_15, %c0_16] : memref<1x16xf32, #tpu.memory_space<vmem>>, vector<1x16xf32>
    %31 = vector.broadcast %30 : vector<1x16xf32> to vector<8x16xf32>
    %32 = arith.addf %29, %31 : vector<8x16xf32>
    %c0_17 = arith.constant 0 : index
    %c0_18 = arith.constant 0 : index
    %33 = vector.load %arg5[%c0_17, %c0_18] : memref<8x16xf32, #tpu.memory_space<vmem>>, vector<8x16xf32>
    tpu.vector_store %arg5[%c0_17, %c0_18], %32 {strides = array<i32>} : memref<8x16xf32, #tpu.memory_space<vmem>>, vector<8x16xf32>,
    return
  }
}

</mosaic_0001>

<llo_original>
// kernel: tpu_custom_call.1
$region0: #{tpu_custom_call.1}
  #allocation0 [shape = 'u32[]', space=smem, size = 0x4, offset = 0x4, fixed_abs, tag = 'smem constant byte address 0x4 - core index']
  #allocation1 [shape = 'u32[72,128]{1,0:T(1,128)}', space=vmem, size = 0x9000, scoped, tag = 'internal scratch']
  %s0 = inlined_call_operand.vmem [shape: f32[8,16], index: 0, kind: input, shape index: {}]
  %s1 = inlined_call_operand.vmem [shape: f32[16,32], index: 1, kind: input, shape index: {}]
  %s2 = inlined_call_operand.vmem [shape: f32[2,32], index: 2, kind: input, shape index: {}]
  %s3 = inlined_call_operand.vmem [shape: f32[32,16], index: 3, kind: input, shape index: {}]
  %s4 = inlined_call_operand.vmem [shape: f32[1,16], index: 4, kind: input, shape index: {}]
  %s5 = inlined_call_operand.hbm [shape: f32[8,16], index: 5, kind: output, shape index: {}]
  %s6 = sld [smem:[#allocation0]]
  $region30: #{tpu_custom_call.1} parent=0
    _
  %s8 = ssub.s32 1, %s6
  %s9 = scalar_select 0, %s8, %s6
  $region1: #{tpu_custom_call.1} parent=0
    #allocation2 [shape = 'u8[4096]{0}', space=vmem, size = 0x1000, scoped, tag = 'output window, operand 0, single buffered']
    #allocation3 [shape = 's32[1]{0}', space=sflag, size = 0x4, scoped, tag = 'scoped memory for tpu_custom_call.1']
    %10 = vsyncpa [#allocation3], 0
    // Predicated region
    $region2: #{tpu_custom_call.1} parent=1 // pred_check
      _
    $region3: #{tpu_custom_call.1} parent=1 // pred_check_branch
      %12 = sbr.rel (0) target = $region5
    $region4: #{tpu_custom_call.1} parent=1 // pred_region
      _
    $region5: #{tpu_custom_call.1} parent=1 // pred_fallthru
      _
    // Predicated region
    $region6: #{tpu_custom_call.1} parent=1 // pred_check
      _
    $region7: #{tpu_custom_call.1} parent=1 // pred_check_branch
      %14 = sbr.rel (0) target = $region9
    $region8: #{tpu_custom_call.1} parent=1 // pred_region
      _
    $region9: #{tpu_custom_call.1} parent=1 // pred_fallthru
      _
    // Predicated region
    $region10: #{tpu_custom_call.1} parent=1 // pred_check
      _
    $region11: #{tpu_custom_call.1} parent=1 // pred_check_branch
      %16 = sbr.rel (0) target = $region13
    $region12: #{tpu_custom_call.1} parent=1 // pred_region
      _
    $region13: #{tpu_custom_call.1} parent=1 // pred_fallthru
      _
    // Predicated region
    $region14: #{tpu_custom_call.1} parent=1 // pred_check
      _
    $region15: #{tpu_custom_call.1} parent=1 // pred_check_branch
      %18 = sbr.rel (0) target = $region17
    $region16: #{tpu_custom_call.1} parent=1 // pred_region
      _
    $region17: #{tpu_custom_call.1} parent=1 // pred_fallthru
      _
    // Predicated region
    $region18: #{tpu_custom_call.1} parent=1 // pred_check
      _
    $region19: #{tpu_custom_call.1} parent=1 // pred_check_branch
      %20 = sbr.rel (0) target = $region21
    $region20: #{tpu_custom_call.1} parent=1 // pred_region
      _
    $region21: #{tpu_custom_call.1} parent=1 // pred_fallthru
      _
    %v21 = vld [vmem:[%s0] sm:$0xff]
    %v22 = vld [vmem:[%s1] sm:$0xff]
    %v23 = vld [vmem:[%s1 + $0x8] sm:$0xff]
    %vm24 = vcmask 130048
    %v26 = vsel %vm24, %v21, 0
    %28 = vmatpush.msra.mxu0 0.0
    %29 = vmatpush.msra.mxu0 0.0
    %30 = vmatpush.msra.mxu0 0.0
    %31 = vmatpush.msra.mxu0 0.0
    %32 = vmatpush.msra.mxu0 0.0
    %33 = vmatpush.msra.mxu0 0.0
    %34 = vmatpush.msra.mxu0 0.0
    %35 = vmatpush.msra.mxu0 0.0
    %36 = vmatpush.msra.mxu0 0.0
    %37 = vmatpush.msra.mxu0 0.0
    %38 = vmatpush.msra.mxu0 0.0
    %39 = vmatpush.msra.mxu0 0.0
    %40 = vmatpush.msra.mxu0 0.0
    %41 = vmatpush.msra.mxu0 0.0
    %42 = vmatpush.msra.mxu0 %v23
    %43 = vmatpush.msra.mxu0 %v22
    %44 = vmatmul.f32.gmra.mxu0 %v26
    %v45 = vpop.f32.mrf.mxu0
    %v46 = vadd.f32 0.0, %v45
    %47 = vdwg.mxu0
    %vm48 = vcmask 261120
    %v49 = vsel %vm48, %v46, 0.0
    %v50 = vrot.slane %v49, 4
    %v51 = vadd.f32 %v49, %v50
    %v52 = vrot.slane %v51, 2
    %v53 = vadd.f32 %v51, %v52
    %v54 = vrot.slane %v53, 1
    %v55 = vadd.f32 %v53, %v54
    %v56 = vmul.f32 %v55, 0.125
    %v57 = vmul.f32 %v46, %v46
    %v58 = vsel %vm48, %v57, 0.0
    %v59 = vrot.slane %v58, 4
    %v60 = vadd.f32 %v58, %v59
    %v61 = vrot.slane %v60, 2
    %v62 = vadd.f32 %v60, %v61
    %v63 = vrot.slane %v62, 1
    %v64 = vadd.f32 %v62, %v63
    %v65 = vmul.f32 %v64, 0.125
    %v66 = vmul.f32 %v56, %v56
    %v67 = vsub.f32 %v65, %v66
    %v68 = vld [vmem:[%s2] sm:$0x1]
    %v69 = vld [vmem:[%s2 + $0x1] sm:$0x1]
    %v70 = vadd.f32 %v67, 1e-05
    %v71 = vrsqrt.pop %v70
    %v72 = vmul.f32 %v71, %v70
    %v73 = vmul.f32 %v72, %v71
    %v74 = vmul.f32 0.5, %v73
    %v75 = vsub.f32 1.5, %v74
    %v76 = vmul.f32 %v71, %v75
    %vm77 = vweird.f32 %v70
    %vm78 = vweird.f32 %v71
    %vm79 = vmor %vm77, %vm78
    %v80 = vsel %vm79, %v71, %v76
    %v81 = vmul.f32 %v68, %v80
    %v82 = vmul.f32 %v56, %v81
    %v83 = vsub.f32 %v69, %v82
    %v84 = vperm.slane %v81, 0
    %v85 = vmul.f32 %v46, %v84
    %v86 = vperm.slane %v83, 0
    %v87 = vadd.f32 %v85, %v86
    %v88 = vmax.f32 %v87, 0.0
    %v89 = vld [vmem:[%s3] sm:$0xff]
    %v90 = vld [vmem:[%s3 + $0x8] sm:$0xff]
    %v91 = vld [vmem:[%s3 + $0x10] sm:$0xff]
    %v92 = vld [vmem:[%s3 + $0x18] sm:$0xff]
    %v93 = vld [vmem:[%s4] sm:$0x1]
    %v95 = vperm.slane %v93, 0
    %v98 = vsel %vm48, %v88, 0
    %100 = vmatpush.msra.mxu0 0.0
    %101 = vmatpush.msra.mxu0 0.0
    %102 = vmatpush.msra.mxu0 0.0
    %103 = vmatpush.msra.mxu0 0.0
    %104 = vmatpush.msra.mxu0 0.0
    %105 = vmatpush.msra.mxu0 0.0
    %106 = vmatpush.msra.mxu0 0.0
    %107 = vmatpush.msra.mxu0 0.0
    %108 = vmatpush.msra.mxu0 0.0
    %109 = vmatpush.msra.mxu0 0.0
    %110 = vmatpush.msra.mxu0 0.0
    %111 = vmatpush.msra.mxu0 0.0
    %112 = vmatpush.msra.mxu0 %v92
    %113 = vmatpush.msra.mxu0 %v91
    %114 = vmatpush.msra.mxu0 %v90
    %115 = vmatpush.msra.mxu0 %v89
    %116 = vmatmul.f32.gmra.mxu0 %v98
    %v117 = vpop.f32.mrf.mxu0
    %v118 = vadd.f32 %v95, %v117
    %119 = vdwg.mxu0
    %120 = vst.msk [vmem:[#allocation2] sm:$0xff] %vm24, %v118
    // Predicated region
    $region22: #{tpu_custom_call.1} parent=1 // pred_check
      _
    $region23: #{tpu_custom_call.1} parent=1 // pred_check_branch
      %122 = sbr.rel (0) target = $region25
    $region24: #{tpu_custom_call.1} parent=1 // pred_region
      %124 = vsyncadd [#allocation3], 0
      %s126 = sshll.u32 [#allocation2], 4
      %s127 = int_to_ptr.vmem [resolvable:$true] %s126
      %s128 = sshll.u32 %s5, 4
      %s129 = int_to_ptr.hbm [resolvable:$true] %s128
      %131 = dma.vmem_to_hbm [thread:$0]  %s127, 128, %s129, [#allocation3]
    $region25: #{tpu_custom_call.1} parent=1 // pred_fallthru
      _
    // Predicated region
    $region26: #{tpu_custom_call.1} parent=1 // pred_check
      _
    $region27: #{tpu_custom_call.1} parent=1 // pred_check_branch
      %133 = sbr.rel (0) target = $region29
    $region28: #{tpu_custom_call.1} parent=1 // pred_region
      %135 = dma.done [#allocation3], 128
    $region29: #{tpu_custom_call.1} parent=1 // pred_fallthru
      _
    %136 = vsyncpa [#allocation3], 1

</llo_original>
